<compile_context>
chip_gen: v5e
topology: v5e:2x2
jax: 0.10.0
libtpu: 0.0.40
codegen_flags: <defaults>
</compile_context>

<pallas_src>
import math

import jax
import jax.numpy as jnp
from jax.experimental import pallas as pl
from jax.experimental.pallas import tpu as pltpu

_REDUCTION_MODES = ("none", "mean", "sum")

_NUM_CORE_SPLITS = 2        # leading "parallel" grid axis (2 TensorCores on v7x)
_MAX_BLOCK_ROWS = 512       # 512 rows x 512 lanes x 4 B = 1 MiB per input block
_VMEM_LIMIT = 32 * 1024 * 1024


def _cdiv(a, b):
    return -(-a // b)


def _round_up(x, m):
    return _cdiv(x, m) * m


def _pick_lane(total):
    for cand in (512, 256):
        if total >= _NUM_CORE_SPLITS * 8 * cand:
            return cand
    return 128


def _to_2d(x, rows_padded, lane):
    """Flatten + zero-pad to a lane-dense (rows_padded, lane) f32 layout."""
    flat = jnp.ravel(x).astype(jnp.float32)
    pad = rows_padded * lane - flat.shape[0]
    if pad:
        flat = jnp.pad(flat, (0, pad))
    return flat.reshape(rows_padded, lane)


# --------------------------- reduction kernels ------------------------------

def _write_partial(o_ref, acc_ref):
    partial = jnp.sum(acc_ref[...])
    r = jax.lax.broadcasted_iota(jnp.int32, o_ref.shape, 0)
    c = jax.lax.broadcasted_iota(jnp.int32, o_ref.shape, 1)
    o_ref[...] = jnp.where((r == 0) & (c == 0), partial, 0.0).astype(o_ref.dtype)


def _sse_kernel(p_ref, t_ref, o_ref, acc_ref):
    i = pl.program_id(1)

    @pl.when(i == 0)
    def _():
        acc_ref[...] = jnp.zeros_like(acc_ref)

    d = p_ref[...].astype(jnp.float32) - t_ref[...].astype(jnp.float32)
    acc_ref[...] += d * d

    @pl.when(i == pl.num_programs(1) - 1)
    def _():
        _write_partial(o_ref, acc_ref)


def _wsse_kernel(p_ref, t_ref, w_ref, o_ref, acc_ref):
    i = pl.program_id(1)

    @pl.when(i == 0)
    def _():
        acc_ref[...] = jnp.zeros_like(acc_ref)

    d = p_ref[...].astype(jnp.float32) - t_ref[...].astype(jnp.float32)
    acc_ref[...] += w_ref[...].astype(jnp.float32) * d * d

    @pl.when(i == pl.num_programs(1) - 1)
    def _():
        _write_partial(o_ref, acc_ref)


def _sse_pallas(pred, target, weight=None):
    """Sum of (optionally weighted) squared errors over all elements."""
    total = math.prod(pred.shape)
    lane = _pick_lane(total)
    rows = _cdiv(total, lane)
    tr = min(_MAX_BLOCK_ROWS, _round_up(max(_cdiv(rows, _NUM_CORE_SPLITS), 1), 8))
    rows_padded = _round_up(rows, _NUM_CORE_SPLITS * tr)
    n_inner = rows_padded // (_NUM_CORE_SPLITS * tr)

    operands = [_to_2d(pred, rows_padded, lane), _to_2d(target, rows_padded, lane)]
    kernel = _sse_kernel
    if weight is not None:
        operands.append(_to_2d(weight, rows_padded, lane))
        kernel = _wsse_kernel

    in_spec = pl.BlockSpec((tr, lane), lambda p, i: (p * n_inner + i, 0))
    partials = pl.pallas_call(
        kernel,
        out_shape=jax.ShapeDtypeStruct((_NUM_CORE_SPLITS * 8, 128), jnp.float32),
        grid_spec=pltpu.PrefetchScalarGridSpec(
            num_scalar_prefetch=0,
            grid=(_NUM_CORE_SPLITS, n_inner),
            in_specs=[in_spec] * len(operands),
            out_specs=pl.BlockSpec((8, 128), lambda p, i: (p, 0)),
            scratch_shapes=[pltpu.VMEM((tr, lane), jnp.float32)],
        ),
        compiler_params=pltpu.CompilerParams(
            dimension_semantics=("parallel", "arbitrary"),
            vmem_limit_bytes=_VMEM_LIMIT,
        ),
    )(*operands)
    # Only entry [0, 0] of each per-core block is non-zero.
    return jnp.sum(partials)


# --------------------------- element-wise kernels ---------------------------

def _sq_err_kernel(p_ref, t_ref, o_ref):
    d = p_ref[...].astype(jnp.float32) - t_ref[...].astype(jnp.float32)
    o_ref[...] = (d * d).astype(o_ref.dtype)


def _wsq_err_kernel(p_ref, t_ref, w_ref, o_ref):
    d = p_ref[...].astype(jnp.float32) - t_ref[...].astype(jnp.float32)
    o_ref[...] = (w_ref[...].astype(jnp.float32) * d * d).astype(o_ref.dtype)


def _sq_err_elementwise_pallas(pred, target, weight=None):
    shape = pred.shape
    total = math.prod(shape)
    lane = _pick_lane(total)
    rows = _cdiv(total, lane)
    tr = min(_MAX_BLOCK_ROWS, _round_up(max(rows, 1), 8))
    rows_padded = _round_up(rows, tr)
    nb = rows_padded // tr

    operands = [_to_2d(pred, rows_padded, lane), _to_2d(target, rows_padded, lane)]
    kernel = _sq_err_kernel
    if weight is not None:
        operands.append(_to_2d(weight, rows_padded, lane))
        kernel = _wsq_err_kernel

    spec = pl.BlockSpec((tr, lane), lambda i: (i, 0))
    out2d = pl.pallas_call(
        kernel,
        out_shape=jax.ShapeDtypeStruct((rows_padded, lane), jnp.float32),
        grid_spec=pltpu.PrefetchScalarGridSpec(
            num_scalar_prefetch=0,
            grid=(nb,),
            in_specs=[spec] * len(operands),
            out_specs=spec,
        ),
        compiler_params=pltpu.CompilerParams(
            dimension_semantics=("parallel",),
            vmem_limit_bytes=_VMEM_LIMIT,
        ),
    )(*operands)
    return out2d.reshape(-1)[:total].reshape(shape)


# ------------------------------ public API ----------------------------------

def mse_loss(pred, target, weight=None, loss_weight=1.0, reduction="mean"):
    """Pallas-backed equivalent of basicsr MSELoss.forward."""
    if reduction not in _REDUCTION_MODES:
        raise ValueError(
            f"Unsupported reduction mode: {reduction}. Supported ones are: {_REDUCTION_MODES}"
        )
    total = math.prod(pred.shape)

    if reduction == "none":
        out = _sq_err_elementwise_pallas(pred, target, weight)
        return jnp.float32(loss_weight) * out

    sse = _sse_pallas(pred, target, weight)
    if reduction == "mean":
        # TODO(synk): basicsr's @weighted_loss decorator is not shown in the spec;
        # weighted 'mean' here is sum(w * (p - t)^2) / numel (plain mean).
        sse = sse / jnp.float32(total)
    return jnp.float32(loss_weight) * sse


class MSELoss:
    """MSE (L2) loss mirroring the PyTorch module's interface."""

    def __init__(self, loss_weight=1.0, reduction="mean"):
        if reduction not in _REDUCTION_MODES:
            raise ValueError(
                f"Unsupported reduction mode: {reduction}. Supported ones are: {_REDUCTION_MODES}"
            )
        self.loss_weight = loss_weight
        self.reduction = reduction

    def __call__(self, pred, target, weight=None, **kwargs):
        return mse_loss(pred, target, weight=weight,
                        loss_weight=self.loss_weight, reduction=self.reduction)


# ------------------------------ reference -----------------------------------

def mse_loss_ref(pred, target, weight=None, loss_weight=1.0, reduction="mean"):
    l = (pred.astype(jnp.float32) - target.astype(jnp.float32)) ** 2
    if weight is not None:
        l = l * weight.astype(jnp.float32)
    if reduction == "mean":
        l = jnp.sum(l) / jnp.float32(math.prod(pred.shape))
    elif reduction == "sum":
        l = jnp.sum(l)
    return jnp.float32(loss_weight) * l


if __name__ == "__main__":
    key = jax.random.PRNGKey(0)
    k1, k2, k3 = jax.random.split(key, 3)
    shape = (2, 4, 16, 16)  # (N, C, H, W)
    pred = jax.random.uniform(k1, shape, dtype=jnp.float32)
    target = jax.random.uniform(k2, shape, dtype=jnp.float32)
    weight = jax.random.uniform(k3, shape, dtype=jnp.float32)

    loss_mod = MSELoss(loss_weight=1.0, reduction="mean")
    out_mean = jax.block_until_ready(loss_mod(pred, target))
    ref_mean = mse_loss_ref(pred, target)
    assert jnp.allclose(out_mean, ref_mean, rtol=1e-5, atol=1e-6), (out_mean, ref_mean)

    out_sum = jax.block_until_ready(mse_loss(pred, target, reduction="sum"))
    ref_sum = mse_loss_ref(pred, target, reduction="sum")
    assert jnp.allclose(out_sum, ref_sum, rtol=1e-5, atol=1e-5), (out_sum, ref_sum)

    out_none = jax.block_until_ready(mse_loss(pred, target, reduction="none"))
    ref_none = mse_loss_ref(pred, target, reduction="none")
    assert jnp.allclose(out_none, ref_none, rtol=1e-5, atol=1e-6)

    out_wmean = jax.block_until_ready(
        mse_loss(pred, target, weight=weight, loss_weight=0.5, reduction="mean"))
    ref_wmean = mse_loss_ref(pred, target, weight=weight, loss_weight=0.5, reduction="mean")
    assert jnp.allclose(out_wmean, ref_wmean, rtol=1e-5, atol=1e-6), (out_wmean, ref_wmean)

    print("KERNEL_OK")
</pallas_src>

<mosaic_0001>
module attributes {stable_mosaic.version = 11 : i64} {
  func.func @_sse_kernel(%arg0: i32, %arg1: i32, %arg2: memref<8x128xf32, #tpu.memory_space<vmem>>, %arg3: memref<8x128xf32, #tpu.memory_space<vmem>>, %arg4: memref<8x128xf32, #tpu.memory_space<vmem>>, %arg5: memref<8x128xf32, #tpu.memory_space<vmem>>) attributes {dimension_semantics = [#tpu.dimension_semantics<parallel>, #tpu.dimension_semantics<arbitrary>], iteration_bounds = array<i64: 2, 1>, scalar_prefetch = 0 : i64, scratch_operands = 1 : i64, tpu.core_type = #tpu.core_type<tc>, window_params = [{transform_indices = @transform_0, window_bounds = array<i64: 8, 128>}, {transform_indices = @transform_1, window_bounds = array<i64: 8, 128>}, {transform_indices = @transform_2, window_bounds = array<i64: 8, 128>}]} {
    %c0_i32 = arith.constant 0 : i32
    %0 = arith.cmpi eq, %arg1, %c0_i32 : i32
    %1 = arith.extui %0 : i1 to i32
    %c0_i32_0 = arith.constant 0 : i32
    %2 = arith.cmpi ne, %1, %c0_i32_0 : i32
    scf.if %2 {
      %cst = arith.constant 0.000000e+00 : f32
      %13 = vector.broadcast %cst : f32 to vector<8x128xf32>
      %c0_10 = arith.constant 0 : index
      %c0_11 = arith.constant 0 : index
      %14 = vector.load %arg5[%c0_10, %c0_11] : memref<8x128xf32, #tpu.memory_space<vmem>>, vector<8x128xf32>
      tpu.vector_store %arg5[%c0_10, %c0_11], %13 {strides = array<i32>} : memref<8x128xf32, #tpu.memory_space<vmem>>, vector<8x128xf32>,
    } else {
    }
    %c0 = arith.constant 0 : index
    %c0_1 = arith.constant 0 : index
    %3 = vector.load %arg2[%c0, %c0_1] : memref<8x128xf32, #tpu.memory_space<vmem>>, vector<8x128xf32>
    %c0_2 = arith.constant 0 : index
    %c0_3 = arith.constant 0 : index
    %4 = vector.load %arg3[%c0_2, %c0_3] : memref<8x128xf32, #tpu.memory_space<vmem>>, vector<8x128xf32>
    %5 = arith.subf %3, %4 : vector<8x128xf32>
    %c0_4 = arith.constant 0 : index
    %c0_5 = arith.constant 0 : index
    %6 = vector.load %arg5[%c0_4, %c0_5] : memref<8x128xf32, #tpu.memory_space<vmem>>, vector<8x128xf32>
    %7 = arith.mulf %5, %5 : vector<8x128xf32>
    %8 = arith.addf %6, %7 : vector<8x128xf32>
    %c0_6 = arith.constant 0 : index
    %c0_7 = arith.constant 0 : index
    %9 = vector.load %arg5[%c0_6, %c0_7] : memref<8x128xf32, #tpu.memory_space<vmem>>, vector<8x128xf32>
    tpu.vector_store %arg5[%c0_6, %c0_7], %8 {strides = array<i32>} : memref<8x128xf32, #tpu.memory_space<vmem>>, vector<8x128xf32>,
    %c0_i32_8 = arith.constant 0 : i32
    %10 = arith.cmpi eq, %arg1, %c0_i32_8 : i32
    %11 = arith.extui %10 : i1 to i32
    %c0_i32_9 = arith.constant 0 : i32
    %12 = arith.cmpi ne, %11, %c0_i32_9 : i32
    scf.if %12 {
      %c0_10 = arith.constant 0 : index
      %c0_11 = arith.constant 0 : index
      %13 = vector.load %arg5[%c0_10, %c0_11] : memref<8x128xf32, #tpu.memory_space<vmem>>, vector<8x128xf32>
      %14 = vector.shape_cast %13 : vector<8x128xf32> to vector<1x8x128xf32>
      %cst = arith.constant dense<0.000000e+00> : vector<1xf32>
      %15 = vector.multi_reduction <add>, %14, %cst [1, 2] : vector<1x8x128xf32> to vector<1xf32>
      %16 = vector.shape_cast %15 : vector<1xf32> to vector<1x1x1xf32>
      %17 = vector.extract %16[0, 0, 0] : f32 from vector<1x1x1xf32>
      %18 = tpu.iota {dimensions = array<i32: 0>} : vector<8x128xi32>
      %19 = tpu.iota {dimensions = array<i32: 1>} : vector<8x128xi32>
      %c0_i32_12 = arith.constant 0 : i32
      %20 = vector.broadcast %c0_i32_12 : i32 to vector<8x128xi32>
      %21 = arith.cmpi eq, %18, %20 : vector<8x128xi32>
      %c0_i32_13 = arith.constant 0 : i32
      %22 = vector.broadcast %c0_i32_13 : i32 to vector<8x128xi32>
      %23 = arith.cmpi eq, %19, %22 : vector<8x128xi32>
      %24 = arith.andi %21, %23 : vector<8x128xi1>
      %cst_14 = arith.constant 0.000000e+00 : f32
      %25 = vector.broadcast %17 : f32 to vector<8x128xf32>
      %26 = vector.broadcast %cst_14 : f32 to vector<8x128xf32>
      %27 = arith.select %24, %25, %26 : vector<8x128xi1>, vector<8x128xf32>
      %c0_15 = arith.constant 0 : index
      %c0_16 = arith.constant 0 : index
      %28 = vector.load %arg4[%c0_15, %c0_16] : memref<8x128xf32, #tpu.memory_space<vmem>>, vector<8x128xf32>
      tpu.vector_store %arg4[%c0_15, %c0_16], %27 {strides = array<i32>} : memref<8x128xf32, #tpu.memory_space<vmem>>, vector<8x128xf32>,
    } else {
    }
    return
  }
  func.func @transform_0(%arg0: i32, %arg1: i32) -> (i32, i32) {
    %c1_i32 = arith.constant 1 : i32
    %0 = arith.muli %arg0, %c1_i32 : i32
    %1 = arith.addi %0, %arg1 : i32
    %c0_i32 = arith.constant 0 : i32
    %c0_i32_0 = arith.constant 0 : i32
    return %1, %c0_i32 : i32, i32
  }
  func.func @transform_1(%arg0: i32, %arg1: i32) -> (i32, i32) {
    %c1_i32 = arith.constant 1 : i32
    %0 = arith.muli %arg0, %c1_i32 : i32
    %1 = arith.addi %0, %arg1 : i32
    %c0_i32 = arith.constant 0 : i32
    %c0_i32_0 = arith.constant 0 : i32
    return %1, %c0_i32 : i32, i32
  }
  func.func @transform_2(%arg0: i32, %arg1: i32) -> (i32, i32) {
    %c0_i32 = arith.constant 0 : i32
    %c0_i32_0 = arith.constant 0 : i32
    return %arg0, %c0_i32 : i32, i32
  }
}

</mosaic_0001>

<llo_original>
// kernel: tpu_custom_call.1
$region0: #{tpu_custom_call.1}
  #allocation0 [shape = 'u32[]', space=smem, size = 0x4, offset = 0x4, fixed_abs, tag = 'smem constant byte address 0x4 - core index']
  #allocation1 [shape = 'u32[72,128]{1,0:T(1,128)}', space=vmem, size = 0x9000, scoped, tag = 'internal scratch']
  #allocation2 [shape = 'f32[8,128]{1,0:T(8,128)}', space=vmem, size = 0x1000, scoped, tag = 'scratch operand']
  %s0 = inlined_call_operand.hbm [shape: f32[16,128], index: 0, kind: input, shape index: {}]
  %s1 = inlined_call_operand.hbm [shape: f32[16,128], index: 1, kind: input, shape index: {}]
  %s2 = inlined_call_operand.hbm [shape: f32[16,128], index: 2, kind: output, shape index: {}]
  %s3 = sld [smem:[#allocation0]]
  $region57: #{tpu_custom_call.1} parent=0
    _
  %s5 = ssub.s32 1, %s3
  %s6 = scalar_select 0, %s5, %s3
  $region1: #{tpu_custom_call.1} parent=0
    #allocation3 [shape = 'u8[8192]{0}', space=vmem, size = 0x2000, scoped, tag = 'input window, operand 0']
    #allocation4 [shape = 's32[2]{0}', space=sflag, size = 0x8, scoped, tag = 'scoped memory for tpu_custom_call.1']
    #allocation5 [shape = 's32[2]{0}', space=sflag, size = 0x8, scoped, tag = 'scoped memory for tpu_custom_call.1']
    #allocation6 [shape = 'u8[8192]{0}', space=vmem, size = 0x2000, scoped, tag = 'input window, operand 1']
    #allocation7 [shape = 's32[2]{0}', space=sflag, size = 0x8, scoped, tag = 'scoped memory for tpu_custom_call.1']
    #allocation8 [shape = 'u8[8192]{0}', space=vmem, size = 0x2000, scoped, tag = 'output window, operand 0']
    %7 = vsyncpa [#allocation4], 0
    %s8 = scalar_lea.sflag [#allocation4], 1
    %9 = vsyncpa %s8, 0
    %10 = vsyncpa [#allocation7], 0
    %s11 = scalar_lea.sflag [#allocation7], 1
    %12 = vsyncpa %s11, 0
    %13 = vsyncpa [#allocation5], 0
    %s14 = scalar_lea.sflag [#allocation5], 1
    %15 = vsyncpa %s14, 0
    loop: start=0, step=1, limit=4
    $region2: #{tpu_custom_call.1} parent=1 // loop_pre_header
      _
    $region3: #{tpu_custom_call.1} parent=1 // loop_header
      %s17 = sphi 0, %s21
      %p18 = scmp.ge.s32.totalorder %s17, 4
      %s24 = sphi 0, %s36
      %s25 = sphi 0, %s32
      %s26 = sphi 0, %s24
      %s27 = sphi 0, %s25
      %s28 = sphi 0, %s26
      %s29 = sphi 0, %s27
      %s41 = sphi 0, %s43
      %s44 = sphi 0, %s41
      %s45 = sphi 0, %s44
      %s61 = sphi 0, %s45
      %s69 = sphi 0, %s71
      %s72 = sphi 0, %s69
      %s73 = sphi 0, %s72
      %s89 = sphi 0, %s73
      %s95 = sphi 0, %s97
      %s98 = sphi 0, %s95
      %s99 = sphi 0, %s98
      %s115 = sphi 0, %s99
    $region4: #{tpu_custom_call.1} parent=1 // loop_header_branch
      %20 = sbr.rel (%p18) target = $region8
    $region5: #{tpu_custom_call.1} parent=1 // loop_body
      %s22 = ssub.s32 %s17, 1
      %s23 = ssub.s32 %s17, 2
      %s30 = sadd.s32 1, %s25
      %p31 = scmp.ge.s32.totalorder %s30, 1
      %s32 = scalar_select %p31, 0, %s30
      %s33 = sadd.s32 1, %s24
      %s34 = scalar_select %p31, %s33, %s24
      %p35 = scmp.ge.s32.totalorder %s34, 2
      %s36 = scalar_select %p35, 0, %s34
      %s37 = sadd.s32 %s24, %s25
      %s38 = sadd.s32 %s36, %s32
      %s39 = ssub.s32 %s37, %s38
      %p40 = scmp.eq.s32.totalorder %s39, 0
      %s42 = sadd.s32 %s41, 1
      %s43 = scalar_select %p40, %s41, %s42
      %p46 = pneg %p40
      %p47 = scmp.eq.s32.totalorder %s17, 1
      %p48 = por %p46, %p47
      %p49 = scmp.ne.s32.totalorder %s41, %s44
      %p50 = scmp.eq.s32.totalorder %s17, 0
      %p51 = por %p49, %p50
      %p52 = scmp.ne.s32.totalorder %s41, %s44
      %p53 = scmp.eq.s32.totalorder %s22, 1
      %p54 = por %p52, %p53
      %p55 = scmp.ne.s32.totalorder %s44, %s45
      %p56 = scmp.eq.s32.totalorder %s22, 0
      %p57 = por %p55, %p56
      %p58 = scmp.ne.s32.totalorder %s44, %s45
      %p59 = scmp.eq.s32.totalorder %s23, 1
      %p60 = por %p58, %p59
      %p62 = scmp.ne.s32.totalorder %s45, %s61
      %p63 = scmp.eq.s32.totalorder %s23, 0
      %p64 = por %p62, %p63
      %s65 = sadd.s32 %s24, %s25
      %s66 = sadd.s32 %s36, %s32
      %s67 = ssub.s32 %s65, %s66
      %p68 = scmp.eq.s32.totalorder %s67, 0
      %s70 = sadd.s32 %s69, 1
      %s71 = scalar_select %p68, %s69, %s70
      %p74 = pneg %p68
      %p75 = scmp.eq.s32.totalorder %s17, 1
      %p76 = por %p74, %p75
      %p77 = scmp.ne.s32.totalorder %s69, %s72
      %p78 = scmp.eq.s32.totalorder %s17, 0
      %p79 = por %p77, %p78
      %p80 = scmp.ne.s32.totalorder %s69, %s72
      %p81 = scmp.eq.s32.totalorder %s22, 1
      %p82 = por %p80, %p81
      %p83 = scmp.ne.s32.totalorder %s72, %s73
      %p84 = scmp.eq.s32.totalorder %s22, 0
      %p85 = por %p83, %p84
      %p86 = scmp.ne.s32.totalorder %s72, %s73
      %p87 = scmp.eq.s32.totalorder %s23, 1
      %p88 = por %p86, %p87
      %p90 = scmp.ne.s32.totalorder %s73, %s89
      %p91 = scmp.eq.s32.totalorder %s23, 0
      %p92 = por %p90, %p91
      %s93 = ssub.s32 %s24, %s36
      %p94 = scmp.eq.s32.totalorder %s93, 0
      %s96 = sadd.s32 %s95, 1
      %s97 = scalar_select %p94, %s95, %s96
      %p100 = pneg %p94
      %p101 = scmp.eq.s32.totalorder %s17, 1
      %p102 = por %p100, %p101
      %p103 = scmp.ne.s32.totalorder %s95, %s98
      %p104 = scmp.eq.s32.totalorder %s17, 0
      %p105 = por %p103, %p104
      %p106 = scmp.ne.s32.totalorder %s95, %s98
      %p107 = scmp.eq.s32.totalorder %s22, 1
      %p108 = por %p106, %p107
      %p109 = scmp.ne.s32.totalorder %s98, %s99
      %p110 = scmp.eq.s32.totalorder %s22, 0
      %p111 = por %p109, %p110
      %p112 = scmp.ne.s32.totalorder %s98, %s99
      %p113 = scmp.eq.s32.totalorder %s23, 1
      %p114 = por %p112, %p113
      %p116 = scmp.ne.s32.totalorder %s99, %s115
      %p117 = scmp.eq.s32.totalorder %s23, 0
      %p118 = por %p116, %p117
      %p119 = scmp.le.s32.totalorder 1, %s17
      %p120 = scmp.lt.s32.totalorder %s17, 3
      %p121 = pnand %p119, %p120
      %p122 = pneg %p121
      // Predicated region
      $region9: #{tpu_custom_call.1} parent=5 // pred_check
        _
      $region10: #{tpu_custom_call.1} parent=5 // pred_check_branch
        %124 = sbr.rel (%p121) target = $region12
      $region11: #{tpu_custom_call.1} parent=5 // pred_region
        %s125 = ssub.s32 %s17, 1
      $region12: #{tpu_custom_call.1} parent=5 // pred_fallthru
        _
      %p126 = scmp.lt.s32.totalorder %s17, 2
      // Predicated region
      $region13: #{tpu_custom_call.1} parent=5 // pred_check
        %p127 = pneg %p126
      $region14: #{tpu_custom_call.1} parent=5 // pred_check_branch
        %129 = sbr.rel (%p127) target = $region16
      $region15: #{tpu_custom_call.1} parent=5 // pred_region
        // Predicated region
        $region17: #{tpu_custom_call.1} parent=15 // pred_check
          %p130 = pneg %p51
        $region18: #{tpu_custom_call.1} parent=15 // pred_check_branch
          %132 = sbr.rel (%p130) target = $region20
        $region19: #{tpu_custom_call.1} parent=15 // pred_region
          %s133 = sand.u32 %s41, 1
          %s134 = scalar_lea.sflag [#allocation4], %s133
          %s135 = sand.u32 %s41, 1
          %s136 = smul.addr %s135, 8
          %s137 = scalar_lea.vmem [#allocation3], %s136
          %s138 = sadd.s32 %s24, %s25
          %140 = vsyncadd %s134, 0
          %s141 = smul.addr %s138, 8
          %s142 = scalar_lea.hbm %s0, %s141
          %s144 = sshll.u32 %s142, 4
          %s145 = int_to_ptr.hbm [resolvable:$true] %s144
          %s146 = sshll.u32 %s137, 4
          %s147 = int_to_ptr.vmem [resolvable:$true] %s146
          %149 = dma.hbm_to_vmem [thread:$0]  %s145, 128, %s147, %s134
        $region20: #{tpu_custom_call.1} parent=15 // pred_fallthru
          _
        // Predicated region
        $region21: #{tpu_custom_call.1} parent=15 // pred_check
          %p150 = pneg %p79
        $region22: #{tpu_custom_call.1} parent=15 // pred_check_branch
          %152 = sbr.rel (%p150) target = $region24
        $region23: #{tpu_custom_call.1} parent=15 // pred_region
          %s153 = sand.u32 %s69, 1
          %s154 = scalar_lea.sflag [#allocation7], %s153
          %s155 = sand.u32 %s69, 1
          %s156 = smul.addr %s155, 8
          %s157 = scalar_lea.vmem [#allocation6], %s156
          %s158 = sadd.s32 %s24, %s25
          %160 = vsyncadd %s154, 0
          %s161 = smul.addr %s158, 8
          %s162 = scalar_lea.hbm %s1, %s161
          %s164 = sshll.u32 %s162, 4
          %s165 = int_to_ptr.hbm [resolvable:$true] %s164
          %s166 = sshll.u32 %s157, 4
          %s167 = int_to_ptr.vmem [resolvable:$true] %s166
          %169 = dma.hbm_to_vmem [thread:$0]  %s165, 128, %s167, %s154
        $region24: #{tpu_custom_call.1} parent=15 // pred_fallthru
          _
      $region16: #{tpu_custom_call.1} parent=5 // pred_fallthru
        _
      %p170 = scmp.le.s32.totalorder 1, %s17
      %p171 = scmp.lt.s32.totalorder %s17, 3
      %p172 = pnand %p170, %p171
      %p173 = pneg %p172
      // Predicated region
      $region25: #{tpu_custom_call.1} parent=5 // pred_check
        _
      $region26: #{tpu_custom_call.1} parent=5 // pred_check_branch
        %175 = sbr.rel (%p172) target = $region28
      $region27: #{tpu_custom_call.1} parent=5 // pred_region
        %s176 = ssub.s32 %s17, 1
        %s177 = sand.u32 %s44, 1
        %s178 = scalar_lea.sflag [#allocation4], %s177
        %s179 = sand.u32 %s44, 1
        %s180 = smul.addr %s179, 8
        %s181 = scalar_lea.vmem [#allocation3], %s180
        // Predicated region
        $region29: #{tpu_custom_call.1} parent=27 // pred_check
          %p182 = pneg %p57
        $region30: #{tpu_custom_call.1} parent=27 // pred_check_branch
          %184 = sbr.rel (%p182) target = $region32
        $region31: #{tpu_custom_call.1} parent=27 // pred_region
          %186 = dma.done %s178, 128
        $region32: #{tpu_custom_call.1} parent=27 // pred_fallthru
          _
        %s187 = sand.u32 %s72, 1
        %s188 = scalar_lea.sflag [#allocation7], %s187
        %s189 = sand.u32 %s72, 1
        %s190 = smul.addr %s189, 8
        %s191 = scalar_lea.vmem [#allocation6], %s190
        // Predicated region
        $region33: #{tpu_custom_call.1} parent=27 // pred_check
          %p192 = pneg %p85
        $region34: #{tpu_custom_call.1} parent=27 // pred_check_branch
          %194 = sbr.rel (%p192) target = $region36
        $region35: #{tpu_custom_call.1} parent=27 // pred_region
          %196 = dma.done %s188, 128
        $region36: #{tpu_custom_call.1} parent=27 // pred_fallthru
          _
        %s197 = sand.u32 %s44, 1
        %s198 = scalar_lea.sflag [#allocation4], %s197
        %s199 = sand.u32 %s44, 1
        %s200 = smul.addr %s199, 8
        %s201 = scalar_lea.vmem [#allocation3], %s200
        %p202 = pneg %p57
        %p203 = pneg %p54
        %s204 = sand.u32 %s72, 1
        %s205 = scalar_lea.sflag [#allocation7], %s204
        %s206 = sand.u32 %s72, 1
        %s207 = smul.addr %s206, 8
        %s208 = scalar_lea.vmem [#allocation6], %s207
        %p209 = pneg %p85
        %p210 = pneg %p82
        %p211 = pneg %p111
        %p212 = pneg %p108
        %s213 = sand.u32 %s98, 1
        %s214 = scalar_lea.sflag [#allocation5], %s213
        %s215 = sand.u32 %s98, 1
        %s216 = smul.addr %s215, 8
        %s217 = scalar_lea.vmem [#allocation8], %s216
        %s218 = sadd.s32 %s26, %s27
        %s219 = sadd.s32 %s26, %s27
        %p220 = scmp.eq.s32.totalorder %s27, 0
        // Predicated region
        $region37: #{tpu_custom_call.1} parent=27 // pred_check
          %p221 = pneg %p220
        $region38: #{tpu_custom_call.1} parent=27 // pred_check_branch
          %223 = sbr.rel (%p221) target = $region40
        $region39: #{tpu_custom_call.1} parent=27 // pred_region
          %224 = vst [vmem:[#allocation2] sm:$0xff] 0.0
        $region40: #{tpu_custom_call.1} parent=27 // pred_fallthru
          _
        %v225 = vld [vmem:[%s181] sm:$0xff]
        %v226 = vld [vmem:[%s191] sm:$0xff]
        %v227 = vsub.f32 %v225, %v226
        %v228 = vld [vmem:[#allocation2] sm:$0xff]
        %v229 = vmul.f32 %v227, %v227
        %v230 = vadd.f32 %v228, %v229
        %231 = vst [vmem:[#allocation2] sm:$0xff] %v230
        // Predicated region
        $region41: #{tpu_custom_call.1} parent=27 // pred_check
          %p232 = pneg %p220
        $region42: #{tpu_custom_call.1} parent=27 // pred_check_branch
          %234 = sbr.rel (%p232) target = $region44
        $region43: #{tpu_custom_call.1} parent=27 // pred_region
          %v235 = vld [vmem:[#allocation2] sm:$0xff]
          %236 = vadd.xlane.f32.xlu0 %v235
          %v237 = vpop.xlane.xlu0 %236
          %v238 = vrot.slane %v237, 4
          %v239 = vadd.f32 %v237, %v238
          %v240 = vrot.slane %v239, 2
          %v241 = vadd.f32 %v239, %v240
          %v242 = vrot.slane %v241, 1
          %v243 = vadd.f32 %v241, %v242
          %s244 = vtos %v243
          %v245 = vlaneseq
          %v246 = vshrl.u32 %v245, 7
          %v247 = vlaneseq
          %v248 = vand.u32 %v247, 127
          %vm249 = vcmp.eq.s32.totalorder %v246, 0
          %vm250 = vcmp.eq.s32.totalorder %v248, 0
          %vm251 = vmand %vm249, %vm250
          %v252 = vstv %s244
          %v253 = vsel %vm251, %v252, 0.0
          %254 = vst [vmem:[%s217] sm:$0xff] %v253
        $region44: #{tpu_custom_call.1} parent=27 // pred_fallthru
          _
        %s255 = sand.u32 %s98, 1
        %s256 = scalar_lea.sflag [#allocation5], %s255
        %s257 = sand.u32 %s98, 1
        %s258 = smul.addr %s257, 8
        %s259 = scalar_lea.vmem [#allocation8], %s258
        // Predicated region
        $region45: #{tpu_custom_call.1} parent=27 // pred_check
          %p260 = pneg %p108
        $region46: #{tpu_custom_call.1} parent=27 // pred_check_branch
          %262 = sbr.rel (%p260) target = $region48
        $region47: #{tpu_custom_call.1} parent=27 // pred_region
          %264 = vsyncadd %s256, 0
          %s265 = smul.addr %s26, 8
          %s266 = scalar_lea.hbm %s2, %s265
          %s268 = sshll.u32 %s259, 4
          %s269 = int_to_ptr.vmem [resolvable:$true] %s268
          %s270 = sshll.u32 %s266, 4
          %s271 = int_to_ptr.hbm [resolvable:$true] %s270
          %273 = dma.vmem_to_hbm [thread:$0]  %s269, 128, %s271, %s256
        $region48: #{tpu_custom_call.1} parent=27 // pred_fallthru
          _
      $region28: #{tpu_custom_call.1} parent=5 // pred_fallthru
        _
      %p274 = scmp.le.s32.totalorder 2, %s17
      // Predicated region
      $region49: #{tpu_custom_call.1} parent=5 // pred_check
        %p275 = pneg %p274
      $region50: #{tpu_custom_call.1} parent=5 // pred_check_branch
        %277 = sbr.rel (%p275) target = $region52
      $region51: #{tpu_custom_call.1} parent=5 // pred_region
        %s278 = ssub.s32 %s17, 2
        // Predicated region
        $region53: #{tpu_custom_call.1} parent=51 // pred_check
          %p279 = pneg %p114
        $region54: #{tpu_custom_call.1} parent=51 // pred_check_branch
          %281 = sbr.rel (%p279) target = $region56
        $region55: #{tpu_custom_call.1} parent=51 // pred_region
          %s282 = sand.u32 %s99, 1
          %s283 = scalar_lea.sflag [#allocation5], %s282
          %s284 = sand.u32 %s99, 1
          %s285 = smul.addr %s284, 8
          %s286 = scalar_lea.vmem [#allocation8], %s285
          %288 = dma.done %s283, 128
        $region56: #{tpu_custom_call.1} parent=51 // pred_fallthru
          _
      $region52: #{tpu_custom_call.1} parent=5 // pred_fallthru
        _
    $region6: #{tpu_custom_call.1} parent=1 // loop_footer
      %s21 = sadd.s32 1, %s17
    $region7: #{tpu_custom_call.1} parent=1 // loop_footer_branch
      %16 = sbr.rel target = $region3
    $region8: #{tpu_custom_call.1} parent=1 // loop_exit
      _
    %289 = vsyncpa [#allocation4], 1
    %s290 = scalar_lea.sflag [#allocation4], 1
    %291 = vsyncpa %s290, 1
    %292 = vsyncpa [#allocation7], 1
    %s293 = scalar_lea.sflag [#allocation7], 1
    %294 = vsyncpa %s293, 1
    %295 = vsyncpa [#allocation5], 1
    %s296 = scalar_lea.sflag [#allocation5], 1
    %297 = vsyncpa %s296, 1

</llo_original>
